<compile_context>
chip_gen: v6e
topology: v6e:2x2x1
jax: 0.10.0
libtpu: 0.0.40
codegen_flags: <defaults>
</compile_context>

<pallas_src>
import functools

import jax
import jax.numpy as jnp
from jax import lax
from jax.experimental import pallas as pl
from jax.experimental.pallas import tpu as pltpu


_LANE = 128   # lane padding for feature dims and adjacency contraction dims
_SUB = 16     # sublane padding for pure row dims (bf16 sublane packing)


def _round_up(n, m):
    return ((n + m - 1) // m) * m


def _pad2(a, rows, cols):
    r, c = a.shape
    return jnp.pad(a, ((0, rows - r), (0, cols - c)))


def _l2_normalize(v):
    # F.normalize(v, p=2, dim=-1) with eps=1e-12, via rsqrt (EUP slot) instead
    # of sqrt + divide (VPU).
    sumsq = jnp.sum(v * v, axis=-1, keepdims=True)
    return v * lax.rsqrt(jnp.maximum(sumsq, 1e-24))


def _sage2_kernel(adj1_ref, adj2_ref, x_ref, wl1_ref, wr1_ref, wl2_ref,
                  wr2_ref, b_ref, o_ref, *, t1p, t2p, premul_l1):
    b = b_ref[...]                                               # (2, Hp)  f32
    x = x_ref[...]                                               # (Sp, Cp) bf16

    # ---------- layer 1 : SAGEConv(Cin -> H), normalize=True, then ReLU -----
    if premul_l1:
        # adj1 @ (x @ W_l): cheaper when hidden < in_channels and S >> T1.
        xw = jnp.dot(x, wl1_ref[...],
                     preferred_element_type=jnp.float32)         # (Sp, Hp)
        aggw1 = jnp.dot(adj1_ref[...], xw.astype(jnp.bfloat16),
                        preferred_element_type=jnp.float32)      # (T1p, Hp)
    else:
        agg1 = jnp.dot(adj1_ref[...], x,
                       preferred_element_type=jnp.float32)       # (T1p, Cp)
        aggw1 = jnp.dot(agg1.astype(jnp.bfloat16), wl1_ref[...],
                        preferred_element_type=jnp.float32)      # (T1p, Hp)
    # Root (self) term: targets are the first rows of the source set.
    h1 = aggw1 + jnp.dot(x[:t1p, :], wr1_ref[...],
                         preferred_element_type=jnp.float32)
    h1 = h1 + b[0:1, :]
    h1 = _l2_normalize(h1)
    h1 = jnp.maximum(h1, 0.0)                                    # ReLU between layers
    h1b = h1.astype(jnp.bfloat16)

    # ---------- layer 2 : SAGEConv(H -> H), normalize=True -------------------
    agg2 = jnp.dot(adj2_ref[...], h1b,
                   preferred_element_type=jnp.float32)           # (T2p, Hp)
    out = jnp.dot(agg2.astype(jnp.bfloat16), wl2_ref[...],
                  preferred_element_type=jnp.float32)
    out = out + jnp.dot(h1b[:t2p, :], wr2_ref[...],
                        preferred_element_type=jnp.float32)
    out = out + b[1:2, :]
    o_ref[...] = _l2_normalize(out)


def _sage2_call(adj1_p, adj2_p, x_p, wl1_p, wr1_p, wl2_p, wr2_p, bias, *,
                premul_l1):
    """Gridless fused pallas_call on pre-padded bf16 operands."""
    T1p, Sp = adj1_p.shape
    T2p, _ = adj2_p.shape
    _, Cp = x_p.shape
    Hp = wl1_p.shape[1]

    if premul_l1:
        l1_flops = 2 * (Sp * Cp * Hp + T1p * Sp * Hp)
    else:
        l1_flops = 2 * (T1p * Sp * Cp + T1p * Cp * Hp)
    flops = (l1_flops
             + 2 * T1p * Cp * Hp                              # x_dst1 @ W_r1
             + 2 * (T2p * T1p * Hp + T2p * Hp * Hp)           # adj2 agg + @W_l2
             + 2 * T2p * Hp * Hp)                             # x_dst2 @ W_r2
    operands = (adj1_p, adj2_p, x_p, wl1_p, wr1_p, wl2_p, wr2_p, bias)
    bytes_accessed = sum(int(a.size) * a.dtype.itemsize for a in operands)
    bytes_accessed += T2p * Hp * 4
    cost = pl.CostEstimate(flops=int(flops),
                           transcendentals=int(T1p + T2p),
                           bytes_accessed=int(bytes_accessed))

    kernel = functools.partial(_sage2_kernel, t1p=T1p, t2p=T2p,
                               premul_l1=premul_l1)
    # Tiny workload: all padded operands fit comfortably in VMEM as single
    # full-array blocks, so the fused kernel is gridless (see TODO at top for
    # the CSR / tiled path needed at real graph sizes).
    return pl.pallas_call(
        kernel,
        out_shape=jax.ShapeDtypeStruct((T2p, Hp), jnp.float32),
        in_specs=[
            pl.BlockSpec((T1p, Sp), lambda: (0, 0)),
            pl.BlockSpec((T2p, T1p), lambda: (0, 0)),
            pl.BlockSpec((Sp, Cp), lambda: (0, 0)),
            pl.BlockSpec((Cp, Hp), lambda: (0, 0)),
            pl.BlockSpec((Cp, Hp), lambda: (0, 0)),
            pl.BlockSpec((Hp, Hp), lambda: (0, 0)),
            pl.BlockSpec((Hp, Hp), lambda: (0, 0)),
            pl.BlockSpec((2, Hp), lambda: (0, 0)),
        ],
        out_specs=pl.BlockSpec((T2p, Hp), lambda: (0, 0)),
        compiler_params=pltpu.CompilerParams(vmem_limit_bytes=32 << 20),
        cost_estimate=cost,
    )(*operands)


# The only thing executed per forward call (prep is hoisted / cached).
sage2_fused = jax.jit(_sage2_call, static_argnames=("premul_l1",))


def _hidden_pad(hidden):
    # v6e/v7x MXU is 2x256 wide: use 256-aligned N when hidden allows; at
    # hidden <= 128 that would only inflate work, so stay 128-aligned.
    return _round_up(hidden, 256) if hidden > _LANE else _round_up(hidden, _LANE)


def prepare_params(params, in_channels, hidden_channels):
    """One-time weight prep: pad to lane-dense shapes, cast to bf16, pack biases."""
    (wl1, b1, wr1), (wl2, b2, wr2) = params
    Cp = _round_up(in_channels, _LANE)
    Hp = _hidden_pad(hidden_channels)
    wl1_p = _pad2(wl1, Cp, Hp).astype(jnp.bfloat16)
    wr1_p = _pad2(wr1, Cp, Hp).astype(jnp.bfloat16)
    wl2_p = _pad2(wl2, Hp, Hp).astype(jnp.bfloat16)
    wr2_p = _pad2(wr2, Hp, Hp).astype(jnp.bfloat16)
    bias = jnp.stack([jnp.pad(b1, (0, Hp - hidden_channels)),
                      jnp.pad(b2, (0, Hp - hidden_channels))]
                     ).astype(jnp.float32)                       # (2, Hp)
    return (wl1_p, wr1_p, wl2_p, wr2_p, bias)


def prepare_graph(x, adjs):
    """One-time graph prep: pad features + dense row-normalized adjacencies.

    Lane (contraction) dims of the adjacencies — Sp for adj1, T1p for adj2 —
    are padded to 128 so the MXU sees full-K, lane-dense tiles.
    """
    (adj1, n_tgt1), (adj2, n_tgt2) = adjs
    n_src, cin = x.shape
    # NeighborSampler convention: targets are the first rows of the source set.
    assert n_tgt1 <= n_src and n_tgt2 <= n_tgt1

    Sp = _round_up(n_src, _LANE)
    T1p = _round_up(n_tgt1, _LANE)
    T2p = _round_up(n_tgt2, _SUB)
    Cp = _round_up(cin, _LANE)

    x_p = _pad2(x, Sp, Cp).astype(jnp.bfloat16)
    adj1_p = _pad2(adj1, T1p, Sp).astype(jnp.bfloat16)
    adj2_p = _pad2(adj2, T2p, T1p).astype(jnp.bfloat16)
    return (adj1_p, adj2_p, x_p), (n_tgt1, n_tgt2)


def sage_forward(x, adjs, params):
    """Convenience wrapper (prep + fused kernel).  For repeated calls with
    static shapes, call prepare_params / prepare_graph once and reuse."""
    in_channels = x.shape[1]
    hidden = params[0][0].shape[1]
    prepped = prepare_params(params, in_channels, hidden)
    (adj1_p, adj2_p, x_p), (_, n_tgt2) = prepare_graph(x, adjs)
    out = sage2_fused(adj1_p, adj2_p, x_p, *prepped,
                      premul_l1=bool(hidden < in_channels))
    return out[:n_tgt2, :hidden]


def build_mean_adj(edge_index, num_src, num_dst):
    """Dense row-normalized adjacency: A[t, s] = 1/deg(t) for each edge s->t."""
    src, dst = edge_index
    A = jnp.zeros((num_dst, num_src), jnp.float32).at[dst, src].add(1.0)
    deg = A.sum(axis=1, keepdims=True)
    return A / jnp.maximum(deg, 1.0)


def init_sage_params(key, in_channels, hidden_channels):
    """Deterministic parameter init (glorot-ish), mirroring the module shapes:
    conv0: SAGEConv(in, hidden); conv1: SAGEConv(hidden, hidden)."""
    params = []
    dims = [(in_channels, hidden_channels), (hidden_channels, hidden_channels)]
    for (cin, cout) in dims:
        key, k1, k2 = jax.random.split(key, 3)
        scale = 1.0 / jnp.sqrt(jnp.float32(cin))
        w_l = jax.random.uniform(k1, (cin, cout), jnp.float32, -scale, scale)
        w_r = jax.random.uniform(k2, (cin, cout), jnp.float32, -scale, scale)
        b_l = jnp.zeros((cout,), jnp.float32)
        params.append((w_l, b_l, w_r))
    return params


def sage_ref(x, adjs, params):
    """Pure-JAX f32 reference matching PyG SAGEConv(mean, normalize=True)."""
    h = x
    n_layers = len(params)
    for i, ((adj, n_tgt), (w_l, b_l, w_r)) in enumerate(zip(adjs, params)):
        agg = adj @ h
        h_dst = h[:n_tgt]
        h = agg @ w_l + b_l + h_dst @ w_r
        norm = jnp.sqrt(jnp.sum(h * h, axis=-1, keepdims=True))
        h = h / jnp.maximum(norm, 1e-12)
        if i != n_layers - 1:
            h = jnp.maximum(h, 0.0)
    return h


if __name__ == "__main__":
    key = jax.random.PRNGKey(0)

    in_channels = 16
    hidden_channels = 32
    n_src = 16      # sampled source nodes (layer-1 neighborhood)
    n_tgt1 = 8      # layer-1 target nodes
    n_tgt2 = 4      # layer-2 target nodes (the seed batch)

    key, kx, ke1s, ke1d, ke2s, ke2d = jax.random.split(key, 6)
    x = jax.random.normal(kx, (n_src, in_channels), jnp.float32)

    # Deterministic synthetic bipartite edge_index for each sampled hop.
    n_edges1, n_edges2 = 48, 24
    ei1 = jnp.stack([
        jax.random.randint(ke1s, (n_edges1,), 0, n_src),
        jax.random.randint(ke1d, (n_edges1,), 0, n_tgt1),
    ])
    ei2 = jnp.stack([
        jax.random.randint(ke2s, (n_edges2,), 0, n_tgt1),
        jax.random.randint(ke2d, (n_edges2,), 0, n_tgt2),
    ])

    adjs = [
        (build_mean_adj(ei1, n_src, n_tgt1), n_tgt1),
        (build_mean_adj(ei2, n_tgt1, n_tgt2), n_tgt2),
    ]
    params = init_sage_params(key, in_channels, hidden_channels)

    # ---- one-time prep (hoisted out of the per-call path) ------------------
    prepped_w = prepare_params(params, in_channels, hidden_channels)
    (adj1_p, adj2_p, x_p), (_, _) = prepare_graph(x, adjs)
    prepped_w = jax.block_until_ready(prepped_w)

    # ---- per-call: only the fused kernel launch -----------------------------
    premul = bool(hidden_channels < in_channels)
    out_padded = sage2_fused(adj1_p, adj2_p, x_p, *prepped_w, premul_l1=premul)
    out_padded = jax.block_until_ready(out_padded)
    out = out_padded[:n_tgt2, :hidden_channels]

    assert out.shape == (n_tgt2, hidden_channels)
    assert bool(jnp.all(jnp.isfinite(out)))

    # normalize=True on the last layer -> rows have unit L2 norm
    row_norms = jnp.sqrt(jnp.sum(out * out, axis=-1))
    assert bool(jnp.all(jnp.abs(row_norms - 1.0) < 1e-3))

    # bf16 MXU operands vs f32 reference: explicit tolerance check.
    ref = sage_ref(x, adjs, params)
    assert bool(jnp.all(jnp.abs(out - ref) < 5e-2))

    print("KERNEL_OK")
</pallas_src>

<mosaic_0001>
module attributes {stable_mosaic.version = 11 : i64} {
  func.func @_sage2_kernel(%arg0: memref<128x128xbf16, #tpu.memory_space<vmem>>, %arg1: memref<16x128xbf16, #tpu.memory_space<vmem>>, %arg2: memref<128x128xbf16, #tpu.memory_space<vmem>>, %arg3: memref<128x128xbf16, #tpu.memory_space<vmem>>, %arg4: memref<128x128xbf16, #tpu.memory_space<vmem>>, %arg5: memref<128x128xbf16, #tpu.memory_space<vmem>>, %arg6: memref<128x128xbf16, #tpu.memory_space<vmem>>, %arg7: memref<2x128xf32, #tpu.memory_space<vmem>>, %arg8: memref<16x128xf32, #tpu.memory_space<vmem>>) attributes {dimension_semantics = [], scalar_prefetch = 0 : i64, scratch_operands = 0 : i64, tpu.core_type = #tpu.core_type<tc>} {
    %c0 = arith.constant 0 : index
    %c0_0 = arith.constant 0 : index
    %0 = vector.load %arg7[%c0, %c0_0] : memref<2x128xf32, #tpu.memory_space<vmem>>, vector<2x128xf32>
    %c0_1 = arith.constant 0 : index
    %c0_2 = arith.constant 0 : index
    %1 = vector.load %arg2[%c0_1, %c0_2] : memref<128x128xbf16, #tpu.memory_space<vmem>>, vector<128x128xbf16>
    %c0_3 = arith.constant 0 : index
    %c0_4 = arith.constant 0 : index
    %2 = vector.load %arg0[%c0_3, %c0_4] : memref<128x128xbf16, #tpu.memory_space<vmem>>, vector<128x128xbf16>
    %cst = arith.constant dense<0.000000e+00> : vector<128x128xf32>
    %3 = tpu.matmul %2, %1, %cst {dimension_numbers = #tpu.dot_dimension_numbers<[1], [0], [0], [1], [0, 0, 1, 1], [], []>} : vector<128x128xbf16>, vector<128x128xbf16>, vector<128x128xf32> -> vector<128x128xf32>
    %4 = arith.truncf %3 : vector<128x128xf32> to vector<128x128xbf16>
    %c0_5 = arith.constant 0 : index
    %c0_6 = arith.constant 0 : index
    %5 = vector.load %arg3[%c0_5, %c0_6] : memref<128x128xbf16, #tpu.memory_space<vmem>>, vector<128x128xbf16>
    %cst_7 = arith.constant dense<0.000000e+00> : vector<128x128xf32>
    %6 = tpu.matmul %4, %5, %cst_7 {dimension_numbers = #tpu.dot_dimension_numbers<[1], [0], [0], [1], [0, 0, 1, 1], [], []>} : vector<128x128xbf16>, vector<128x128xbf16>, vector<128x128xf32> -> vector<128x128xf32>
    %c0_8 = arith.constant 0 : index
    %c0_9 = arith.constant 0 : index
    %7 = vector.load %arg4[%c0_8, %c0_9] : memref<128x128xbf16, #tpu.memory_space<vmem>>, vector<128x128xbf16>
    %cst_10 = arith.constant dense<0.000000e+00> : vector<128x128xf32>
    %8 = tpu.matmul %1, %7, %cst_10 {dimension_numbers = #tpu.dot_dimension_numbers<[1], [0], [0], [1], [0, 0, 1, 1], [], []>} : vector<128x128xbf16>, vector<128x128xbf16>, vector<128x128xf32> -> vector<128x128xf32>
    %9 = arith.addf %6, %8 : vector<128x128xf32>
    %10 = vector.extract_strided_slice %0 {offsets = [0, 0], sizes = [1, 128], strides = [1, 1]} : vector<2x128xf32> to vector<1x128xf32>
    %11 = vector.broadcast %10 : vector<1x128xf32> to vector<128x128xf32>
    %12 = arith.addf %9, %11 : vector<128x128xf32>
    %13 = arith.mulf %12, %12 : vector<128x128xf32>
    %cst_11 = arith.constant dense<0.000000e+00> : vector<128xf32>
    %14 = vector.multi_reduction <add>, %13, %cst_11 [1] : vector<128x128xf32> to vector<128xf32>
    %15 = vector.shape_cast %14 : vector<128xf32> to vector<128x1xf32>
    %cst_12 = arith.constant 1.000000e-24 : f32
    %16 = vector.broadcast %cst_12 : f32 to vector<128x1xf32>
    %17 = arith.maximumf %15, %16 : vector<128x1xf32>
    %18 = math.rsqrt %17 : vector<128x1xf32>
    %19 = vector.broadcast %18 : vector<128x1xf32> to vector<128x128xf32>
    %20 = arith.mulf %12, %19 : vector<128x128xf32>
    %cst_13 = arith.constant 0.000000e+00 : f32
    %21 = vector.broadcast %cst_13 : f32 to vector<128x128xf32>
    %22 = arith.maximumf %20, %21 : vector<128x128xf32>
    %23 = arith.truncf %22 : vector<128x128xf32> to vector<128x128xbf16>
    %c0_14 = arith.constant 0 : index
    %c0_15 = arith.constant 0 : index
    %24 = vector.load %arg1[%c0_14, %c0_15] : memref<16x128xbf16, #tpu.memory_space<vmem>>, vector<16x128xbf16>
    %cst_16 = arith.constant dense<0.000000e+00> : vector<16x128xf32>
    %25 = tpu.matmul %24, %23, %cst_16 {dimension_numbers = #tpu.dot_dimension_numbers<[1], [0], [0], [1], [0, 0, 1, 1], [], []>} : vector<16x128xbf16>, vector<128x128xbf16>, vector<16x128xf32> -> vector<16x128xf32>
    %26 = arith.truncf %25 : vector<16x128xf32> to vector<16x128xbf16>
    %c0_17 = arith.constant 0 : index
    %c0_18 = arith.constant 0 : index
    %27 = vector.load %arg5[%c0_17, %c0_18] : memref<128x128xbf16, #tpu.memory_space<vmem>>, vector<128x128xbf16>
    %cst_19 = arith.constant dense<0.000000e+00> : vector<16x128xf32>
    %28 = tpu.matmul %26, %27, %cst_19 {dimension_numbers = #tpu.dot_dimension_numbers<[1], [0], [0], [1], [0, 0, 1, 1], [], []>} : vector<16x128xbf16>, vector<128x128xbf16>, vector<16x128xf32> -> vector<16x128xf32>
    %29 = vector.extract_strided_slice %23 {offsets = [0, 0], sizes = [16, 128], strides = [1, 1]} : vector<128x128xbf16> to vector<16x128xbf16>
    %c0_20 = arith.constant 0 : index
    %c0_21 = arith.constant 0 : index
    %30 = vector.load %arg6[%c0_20, %c0_21] : memref<128x128xbf16, #tpu.memory_space<vmem>>, vector<128x128xbf16>
    %cst_22 = arith.constant dense<0.000000e+00> : vector<16x128xf32>
    %31 = tpu.matmul %29, %30, %cst_22 {dimension_numbers = #tpu.dot_dimension_numbers<[1], [0], [0], [1], [0, 0, 1, 1], [], []>} : vector<16x128xbf16>, vector<128x128xbf16>, vector<16x128xf32> -> vector<16x128xf32>
    %32 = arith.addf %28, %31 : vector<16x128xf32>
    %33 = vector.extract_strided_slice %0 {offsets = [1, 0], sizes = [1, 128], strides = [1, 1]} : vector<2x128xf32> to vector<1x128xf32>
    %34 = vector.broadcast %33 : vector<1x128xf32> to vector<16x128xf32>
    %35 = arith.addf %32, %34 : vector<16x128xf32>
    %36 = arith.mulf %35, %35 : vector<16x128xf32>
    %cst_23 = arith.constant dense<0.000000e+00> : vector<16xf32>
    %37 = vector.multi_reduction <add>, %36, %cst_23 [1] : vector<16x128xf32> to vector<16xf32>
    %38 = vector.shape_cast %37 : vector<16xf32> to vector<16x1xf32>
    %cst_24 = arith.constant 1.000000e-24 : f32
    %39 = vector.broadcast %cst_24 : f32 to vector<16x1xf32>
    %40 = arith.maximumf %38, %39 : vector<16x1xf32>
    %41 = math.rsqrt %40 : vector<16x1xf32>
    %42 = vector.broadcast %41 : vector<16x1xf32> to vector<16x128xf32>
    %43 = arith.mulf %35, %42 : vector<16x128xf32>
    %c0_25 = arith.constant 0 : index
    %c0_26 = arith.constant 0 : index
    %44 = vector.load %arg8[%c0_25, %c0_26] : memref<16x128xf32, #tpu.memory_space<vmem>>, vector<16x128xf32>
    tpu.vector_store %arg8[%c0_25, %c0_26], %43 {strides = array<i32>} : memref<16x128xf32, #tpu.memory_space<vmem>>, vector<16x128xf32>,
    return
  }
}

</mosaic_0001>

<llo_original>
// kernel: _sage2_call.1
$region0: #{_sage2_call.1}
  #allocation0 [shape = 'u32[]', space=smem, size = 0x4, offset = 0x4, fixed_abs, tag = 'smem constant byte address 0x4 - core index']
  #allocation1 [shape = 'u32[144,128]{1,0:T(1,128)}', space=vmem, size = 0x12000, scoped, tag = 'internal scratch']
  %s0 = inlined_call_operand.hbm [shape: bf16[128,128], index: 0, kind: input, shape index: {}]
  %s1 = inlined_call_operand.hbm [shape: bf16[16,128], index: 1, kind: input, shape index: {}]
  %s2 = inlined_call_operand.hbm [shape: bf16[128,128], index: 2, kind: input, shape index: {}]
  %s3 = inlined_call_operand.hbm [shape: bf16[128,128], index: 3, kind: input, shape index: {}]
  %s4 = inlined_call_operand.hbm [shape: bf16[128,128], index: 4, kind: input, shape index: {}]
  %s5 = inlined_call_operand.hbm [shape: bf16[128,128], index: 5, kind: input, shape index: {}]
  %s6 = inlined_call_operand.hbm [shape: bf16[128,128], index: 6, kind: input, shape index: {}]
  %s7 = inlined_call_operand.vmem [shape: f32[2,128], index: 7, kind: input, shape index: {}]
  %s8 = inlined_call_operand.hbm [shape: f32[16,128], index: 8, kind: output, shape index: {}]
  %s9 = sld [smem:[#allocation0]]
  $region70: #{_sage2_call.1} parent=0
    _
  %s11 = ssub.s32 1, %s9
  %s12 = scalar_select 0, %s11, %s9
  $region1: #{_sage2_call.1} parent=0
    #allocation2 [shape = 'u8[32768]{0}', space=vmem, size = 0x8000, scoped, tag = 'input window, operand 0, single buffered']
    #allocation3 [shape = 's32[1]{0}', space=sflag, size = 0x4, scoped, tag = 'scoped memory for _sage2_call.1']
    #allocation4 [shape = 's32[1]{0}', space=sflag, size = 0x4, scoped, tag = 'scoped memory for _sage2_call.1']
    #allocation5 [shape = 'u8[4096]{0}', space=vmem, size = 0x1000, scoped, tag = 'input window, operand 1, single buffered']
    #allocation6 [shape = 's32[1]{0}', space=sflag, size = 0x4, scoped, tag = 'scoped memory for _sage2_call.1']
    #allocation7 [shape = 'u8[32768]{0}', space=vmem, size = 0x8000, scoped, tag = 'input window, operand 2, single buffered']
    #allocation8 [shape = 'u8[32768]{0}', space=vmem, size = 0x8000, scoped, tag = 'input window, operand 3, single buffered']
    #allocation9 [shape = 's32[1]{0}', space=sflag, size = 0x4, scoped, tag = 'scoped memory for _sage2_call.1']
    #allocation10 [shape = 'u8[32768]{0}', space=vmem, size = 0x8000, scoped, tag = 'input window, operand 4, single buffered']
    #allocation11 [shape = 'u8[32768]{0}', space=vmem, size = 0x8000, scoped, tag = 'input window, operand 5, single buffered']
    #allocation12 [shape = 's32[1]{0}', space=sflag, size = 0x4, scoped, tag = 'scoped memory for _sage2_call.1']
    #allocation13 [shape = 'u8[32768]{0}', space=vmem, size = 0x8000, scoped, tag = 'input window, operand 6, single buffered']
    #allocation14 [shape = 'u8[8192]{0}', space=vmem, size = 0x2000, scoped, tag = 'output window, operand 0, single buffered']
    %13 = vsyncpa [#allocation3], 0
    %14 = vsyncpa [#allocation6], 0
    %15 = vsyncpa [#allocation9], 0
    %16 = vsyncpa [#allocation12], 0
    %17 = vsyncpa [#allocation4], 0
    // Predicated region
    $region2: #{_sage2_call.1} parent=1 // pred_check
      _
    $region3: #{_sage2_call.1} parent=1 // pred_check_branch
      %19 = sbr.rel (0) target = $region5
    $region4: #{_sage2_call.1} parent=1 // pred_region
      %s21 = ssub.s32 1024, 1024
      %22 = vsyncadd [#allocation3], %s21
      %s23 = sshll.u32 [#allocation2], 4
      %s24 = int_to_ptr.vmem [resolvable:$true] %s23
      %29 = dma.hbm_to_vmem [thread:$0]  %s0, 1024, %s24, [#allocation3], 64, 64, 4
    $region5: #{_sage2_call.1} parent=1 // pred_fallthru
      _
    // Predicated region
    $region6: #{_sage2_call.1} parent=1 // pred_check
      _
    $region7: #{_sage2_call.1} parent=1 // pred_check_branch
      %31 = sbr.rel (0) target = $region9
    $region8: #{_sage2_call.1} parent=1 // pred_region
      %s33 = ssub.s32 128, 128
      %34 = vsyncadd [#allocation6], %s33
      %s35 = sshll.u32 [#allocation5], 4
      %s36 = int_to_ptr.vmem [resolvable:$true] %s35
      %41 = dma.hbm_to_vmem [thread:$0]  %s1, 128, %s36, [#allocation6], 64, 64, 4
    $region9: #{_sage2_call.1} parent=1 // pred_fallthru
      _
    // Predicated region
    $region10: #{_sage2_call.1} parent=1 // pred_check
      _
    $region11: #{_sage2_call.1} parent=1 // pred_check_branch
      %43 = sbr.rel (0) target = $region13
    $region12: #{_sage2_call.1} parent=1 // pred_region
      %s45 = ssub.s32 1024, 1024
      %46 = vsyncadd [#allocation6], %s45
      %s47 = sshll.u32 [#allocation7], 4
      %s48 = int_to_ptr.vmem [resolvable:$true] %s47
      %53 = dma.hbm_to_vmem [thread:$0]  %s2, 1024, %s48, [#allocation6], 64, 64, 4
    $region13: #{_sage2_call.1} parent=1 // pred_fallthru
      _
    // Predicated region
    $region14: #{_sage2_call.1} parent=1 // pred_check
      _
    $region15: #{_sage2_call.1} parent=1 // pred_check_branch
      %55 = sbr.rel (0) target = $region17
    $region16: #{_sage2_call.1} parent=1 // pred_region
      %s57 = ssub.s32 1024, 1024
      %58 = vsyncadd [#allocation9], %s57
      %s59 = sshll.u32 [#allocation8], 4
      %s60 = int_to_ptr.vmem [resolvable:$true] %s59
      %65 = dma.hbm_to_vmem [thread:$0]  %s3, 1024, %s60, [#allocation9], 64, 64, 4
    $region17: #{_sage2_call.1} parent=1 // pred_fallthru
      _
    // Predicated region
    $region18: #{_sage2_call.1} parent=1 // pred_check
      _
    $region19: #{_sage2_call.1} parent=1 // pred_check_branch
      %67 = sbr.rel (0) target = $region21
    $region20: #{_sage2_call.1} parent=1 // pred_region
      %s69 = ssub.s32 1024, 1024
      %70 = vsyncadd [#allocation9], %s69
      %s71 = sshll.u32 [#allocation10], 4
      %s72 = int_to_ptr.vmem [resolvable:$true] %s71
      %77 = dma.hbm_to_vmem [thread:$0]  %s4, 1024, %s72, [#allocation9], 64, 64, 4
    $region21: #{_sage2_call.1} parent=1 // pred_fallthru
      _
    // Predicated region
    $region22: #{_sage2_call.1} parent=1 // pred_check
      _
    $region23: #{_sage2_call.1} parent=1 // pred_check_branch
      %79 = sbr.rel (0) target = $region25
    $region24: #{_sage2_call.1} parent=1 // pred_region
      %s81 = ssub.s32 1024, 1024
      %82 = vsyncadd [#allocation12], %s81
      %s83 = sshll.u32 [#allocation11], 4
      %s84 = int_to_ptr.vmem [resolvable:$true] %s83
      %89 = dma.hbm_to_vmem [thread:$0]  %s5, 1024, %s84, [#allocation12], 64, 64, 4
    $region25: #{_sage2_call.1} parent=1 // pred_fallthru
      _
    // Predicated region
    $region26: #{_sage2_call.1} parent=1 // pred_check
      _
    $region27: #{_sage2_call.1} parent=1 // pred_check_branch
      %91 = sbr.rel (0) target = $region29
    $region28: #{_sage2_call.1} parent=1 // pred_region
      %s93 = ssub.s32 1024, 1024
      %94 = vsyncadd [#allocation12], %s93
      %s95 = sshll.u32 [#allocation13], 4
      %s96 = int_to_ptr.vmem [resolvable:$true] %s95
      %101 = dma.hbm_to_vmem [thread:$0]  %s6, 1024, %s96, [#allocation12], 64, 64, 4
    $region29: #{_sage2_call.1} parent=1 // pred_fallthru
      _
    // Predicated region
    $region30: #{_sage2_call.1} parent=1 // pred_check
      _
    $region31: #{_sage2_call.1} parent=1 // pred_check_branch
      %103 = sbr.rel (0) target = $region33
    $region32: #{_sage2_call.1} parent=1 // pred_region
      _
    $region33: #{_sage2_call.1} parent=1 // pred_fallthru
      _
    // Predicated region
    $region34: #{_sage2_call.1} parent=1 // pred_check
      _
    $region35: #{_sage2_call.1} parent=1 // pred_check_branch
      %105 = sbr.rel (0) target = $region37
    $region36: #{_sage2_call.1} parent=1 // pred_region
      %106 = dma.done [#allocation3], 1024
    $region37: #{_sage2_call.1} parent=1 // pred_fallthru
      _
    // Predicated region
    $region38: #{_sage2_call.1} parent=1 // pred_check
      _
    $region39: #{_sage2_call.1} parent=1 // pred_check_branch
      %108 = sbr.rel (0) target = $region41
    $region40: #{_sage2_call.1} parent=1 // pred_region
      %109 = dma.done [#allocation6], 128
    $region41: #{_sage2_call.1} parent=1 // pred_fallthru
      _
    // Predicated region
    $region42: #{_sage2_call.1} parent=1 // pred_check
      _
    $region43: #{_sage2_call.1} parent=1 // pred_check_branch
      %111 = sbr.rel (0) target = $region45
    $region44: #{_sage2_call.1} parent=1 // pred_region
      %112 = dma.done [#allocation6], 1024
    $region45: #{_sage2_call.1} parent=1 // pred_fallthru
      _
    // Predicated region
    $region46: #{_sage2_call.1} parent=1 // pred_check
      _
    $region47: #{_sage2_call.1} parent=1 // pred_check_branch
      %114 = sbr.rel (0) target = $region49
    $region48: #{_sage2_call.1} parent=1 // pred_region
      %115 = dma.done [#allocation9], 1024
    $region49: #{_sage2_call.1} parent=1 // pred_fallthru
      _
    // Predicated region
    $region50: #{_sage2_call.1} parent=1 // pred_check
      _
    $region51: #{_sage2_call.1} parent=1 // pred_check_branch
      %117 = sbr.rel (0) target = $region53
    $region52: #{_sage2_call.1} parent=1 // pred_region
      %118 = dma.done [#allocation9], 1024
    $region53: #{_sage2_call.1} parent=1 // pred_fallthru
      _
    // Predicated region
    $region54: #{_sage2_call.1} parent=1 // pred_check
      _
    $region55: #{_sage2_call.1} parent=1 // pred_check_branch
      %120 = sbr.rel (0) target = $region57
    $region56: #{_sage2_call.1} parent=1 // pred_region
      %121 = dma.done [#allocation12], 1024
    $region57: #{_sage2_call.1} parent=1 // pred_fallthru
      _
    // Predicated region
    $region58: #{_sage2_call.1} parent=1 // pred_check
      _
    $region59: #{_sage2_call.1} parent=1 // pred_check_branch
      %123 = sbr.rel (0) target = $region61
    $region60: #{_sage2_call.1} parent=1 // pred_region
      %124 = dma.done [#allocation12], 1024
    $region61: #{_sage2_call.1} parent=1 // pred_fallthru
      _
    %v126 = vld [vmem:[%s7] sm:$0x3]
    %v127 = vld [vmem:[#allocation7] sm:$0xf]
    %v128 = vld [vmem:[#allocation7 + $0x4] sm:$0xf]
    %v129 = vld [vmem:[#allocation7 + $0x8] sm:$0xf]
    %v130 = vld [vmem:[#allocation7 + $0xc] sm:$0xf]
    %v131 = vld [vmem:[#allocation7 + $0x10] sm:$0xf]
    %v132 = vld [vmem:[#allocation7 + $0x14] sm:$0xf]
    %v133 = vld [vmem:[#allocation7 + $0x18] sm:$0xf]
    %v134 = vld [vmem:[#allocation7 + $0x1c] sm:$0xf]
    %v135 = vld [vmem:[#allocation7 + $0x20] sm:$0xf]
    %v136 = vld [vmem:[#allocation7 + $0x24] sm:$0xf]
    %v137 = vld [vmem:[#allocation7 + $0x28] sm:$0xf]
    %v138 = vld [vmem:[#allocation7 + $0x2c] sm:$0xf]
    %v139 = vld [vmem:[#allocation7 + $0x30] sm:$0xf]
    %v140 = vld [vmem:[#allocation7 + $0x34] sm:$0xf]
    %v141 = vld [vmem:[#allocation7 + $0x38] sm:$0xf]
    %v142 = vld [vmem:[#allocation7 + $0x3c] sm:$0xf]
    %v143 = vld [vmem:[#allocation2] sm:$0xf]
    %v144 = vld [vmem:[#allocation2 + $0x4] sm:$0xf]
    %v145 = vld [vmem:[#allocation2 + $0x8] sm:$0xf]
    %v146 = vld [vmem:[#allocation2 + $0xc] sm:$0xf]
    %v147 = vld [vmem:[#allocation2 + $0x10] sm:$0xf]
    %v148 = vld [vmem:[#allocation2 + $0x14] sm:$0xf]
    %v149 = vld [vmem:[#allocation2 + $0x18] sm:$0xf]
    %v150 = vld [vmem:[#allocation2 + $0x1c] sm:$0xf]
    %v151 = vld [vmem:[#allocation2 + $0x20] sm:$0xf]
    %v152 = vld [vmem:[#allocation2 + $0x24] sm:$0xf]
    %v153 = vld [vmem:[#allocation2 + $0x28] sm:$0xf]
    %v154 = vld [vmem:[#allocation2 + $0x2c] sm:$0xf]
    %v155 = vld [vmem:[#allocation2 + $0x30] sm:$0xf]
    %v156 = vld [vmem:[#allocation2 + $0x34] sm:$0xf]
    %v157 = vld [vmem:[#allocation2 + $0x38] sm:$0xf]
    %v158 = vld [vmem:[#allocation2 + $0x3c] sm:$0xf]
    %v175 = vunpack.c.l.b16 %v143
    %v176 = vunpack.c.l.b16 %v144
    %v177 = vunpack.c.l.b16 %v145
    %v178 = vunpack.c.l.b16 %v146
    %v179 = vunpack.c.l.b16 %v147
    %v180 = vunpack.c.l.b16 %v148
    %v181 = vunpack.c.l.b16 %v149
    %v182 = vunpack.c.l.b16 %v150
    %v183 = vunpack.c.l.b16 %v151
    %v184 = vunpack.c.l.b16 %v152
    %v185 = vunpack.c.l.b16 %v153
    %v186 = vunpack.c.l.b16 %v154
    %v187 = vunpack.c.l.b16 %v155
    %v188 = vunpack.c.l.b16 %v156
    %v189 = vunpack.c.l.b16 %v157
    %v190 = vunpack.c.l.b16 %v158
    %v191 = vpack.c.b16 %v176, %v175
    %v192 = vpack.c.b16 %v178, %v177
    %v193 = vpack.c.b16 %v180, %v179
    %v194 = vpack.c.b16 %v182, %v181
    %v195 = vpack.c.b16 %v184, %v183
    %v196 = vpack.c.b16 %v186, %v185
    %v197 = vpack.c.b16 %v188, %v187
    %v198 = vpack.c.b16 %v190, %v189
    %v223 = vunpack.c.l.b16 %v127
    %v224 = vunpack.c.l.b16 %v128
    %v225 = vunpack.c.l.b16 %v129
    %v226 = vunpack.c.l.b16 %v130
    %v227 = vunpack.c.l.b16 %v131
    %v228 = vunpack.c.l.b16 %v132
    %v229 = vunpack.c.l.b16 %v133
    %v230 = vunpack.c.l.b16 %v134
    %v231 = vunpack.c.l.b16 %v135
    %v232 = vunpack.c.l.b16 %v136
    %v233 = vunpack.c.l.b16 %v137
    %v234 = vunpack.c.l.b16 %v138
    %v235 = vunpack.c.l.b16 %v139
    %v236 = vunpack.c.l.b16 %v140
    %v237 = vunpack.c.l.b16 %v141
    %v238 = vunpack.c.l.b16 %v142
    %v239 = vpack.c.b16 %v224, %v223
    %v240 = vpack.c.b16 %v226, %v225
    %v241 = vpack.c.b16 %v228, %v227
    %v242 = vpack.c.b16 %v230, %v229
    %v243 = vpack.c.b16 %v232, %v231
    %v244 = vpack.c.b16 %v234, %v233
    %v245 = vpack.c.b16 %v236, %v235
    %v246 = vpack.c.b16 %v238, %v237
    %255 = vmatprep.subr.bf16.mxu0 0
    %256 = vmatpush1.bf16.msra.mxu0 %v246
    %257 = vmatprep.subr.bf16.mxu0 0
    %258 = vmatpush1.bf16.msra.mxu0 %v245
    %259 = vmatprep.subr.bf16.mxu0 0
    %260 = vmatpush1.bf16.msra.mxu0 %v244
    %261 = vmatprep.subr.bf16.mxu0 0
    %262 = vmatpush1.bf16.msra.mxu0 %v243
    %263 = vmatprep.subr.bf16.mxu0 0
    %264 = vmatpush1.bf16.msra.mxu0 %v242
    %265 = vmatprep.subr.bf16.mxu0 0
    %266 = vmatpush1.bf16.msra.mxu0 %v241
    %267 = vmatprep.subr.bf16.mxu0 0
    %268 = vmatpush1.bf16.msra.mxu0 %v240
    %269 = vmatprep.subr.bf16.mxu0 0
    %270 = vmatpush1.bf16.msra.mxu0 %v239
    %271 = vmatprep.subr.bf16.mxu0 0
    %272 = vmatpush2.bf16.msra.mxu0 0
    %273 = vmatprep.subr.bf16.mxu0 0
    %274 = vmatpush2.bf16.msra.mxu0 0
    %275 = vmatprep.subr.bf16.mxu0 0
    %276 = vmatpush2.bf16.msra.mxu0 0
    %277 = vmatprep.subr.bf16.mxu0 0
    %278 = vmatpush2.bf16.msra.mxu0 0
    %279 = vmatprep.subr.bf16.mxu0 0
    %280 = vmatpush2.bf16.msra.mxu0 0
    %281 = vmatprep.subr.bf16.mxu0 0
    %282 = vmatpush2.bf16.msra.mxu0 0
    %283 = vmatprep.subr.bf16.mxu0 0
    %284 = vmatpush2.bf16.msra.mxu0 0
    %285 = vmatprep.subr.bf16.mxu0 0
    %286 = vmatpush2.bf16.msra.mxu0 0
    %287 = vmatprep.mubr.bf16.mxu0 0
    %288 = vmatmul.mubr.bf16.gmra.mxu0 %v191
    %v289 = vpop.f32.mrf.mxu0
    %v290 = vadd.f32 0.0, %v289
    %v291 = vpop.f32.mrf.mxu0
    %v292 = vpop.f32.mrf.mxu0
    %v293 = vadd.f32 0.0, %v292
    %v294 = vpop.f32.mrf.mxu0
    %295 = vmatprep.mubr.bf16.mxu0 0
    %296 = vmatmul.mubr.bf16.gmra.mxu0 %v192
    %v297 = vpop.f32.mrf.mxu0
    %v298 = vadd.f32 0.0, %v297
    %v299 = vpop.f32.mrf.mxu0
    %v300 = vpop.f32.mrf.mxu0
    %v301 = vadd.f32 0.0, %v300
    %v302 = vpop.f32.mrf.mxu0
    %303 = vmatprep.mubr.bf16.mxu0 0
    %304 = vmatmul.mubr.bf16.gmra.mxu0 %v193
    %v305 = vpop.f32.mrf.mxu0
    %v306 = vadd.f32 0.0, %v305
    %v307 = vpop.f32.mrf.mxu0
    %v308 = vpop.f32.mrf.mxu0
    %v309 = vadd.f32 0.0, %v308
    %v310 = vpop.f32.mrf.mxu0
    %311 = vmatprep.mubr.bf16.mxu0 0
    %312 = vmatmul.mubr.bf16.gmra.mxu0 %v194
    %v313 = vpop.f32.mrf.mxu0
    %v314 = vadd.f32 0.0, %v313
    %v315 = vpop.f32.mrf.mxu0
    %v316 = vpop.f32.mrf.mxu0
    %v317 = vadd.f32 0.0, %v316
    %v318 = vpop.f32.mrf.mxu0
    %319 = vmatprep.mubr.bf16.mxu0 0
    %320 = vmatmul.mubr.bf16.gmra.mxu0 %v195
    %v321 = vpop.f32.mrf.mxu0
    %v322 = vadd.f32 0.0, %v321
    %v323 = vpop.f32.mrf.mxu0
    %v324 = vpop.f32.mrf.mxu0
    %v325 = vadd.f32 0.0, %v324
    %v326 = vpop.f32.mrf.mxu0
    %327 = vmatprep.mubr.bf16.mxu0 0
    %328 = vmatmul.mubr.bf16.gmra.mxu0 %v196
    %v329 = vpop.f32.mrf.mxu0
    %v330 = vadd.f32 0.0, %v329
    %v331 = vpop.f32.mrf.mxu0
    %v332 = vpop.f32.mrf.mxu0
    %v333 = vadd.f32 0.0, %v332
    %v334 = vpop.f32.mrf.mxu0
    %335 = vmatprep.mubr.bf16.mxu0 0
    %336 = vmatmul.mubr.bf16.gmra.mxu0 %v197
    %v337 = vpop.f32.mrf.mxu0
    %v338 = vadd.f32 0.0, %v337
    %v339 = vpop.f32.mrf.mxu0
    %v340 = vpop.f32.mrf.mxu0
    %v341 = vadd.f32 0.0, %v340
    %v342 = vpop.f32.mrf.mxu0
    %343 = vmatprep.mubr.bf16.mxu0 0
    %344 = vmatmul.mubr.bf16.gmra.mxu0 %v198
    %v345 = vpop.f32.mrf.mxu0
    %v346 = vadd.f32 0.0, %v345
    %v347 = vpop.f32.mrf.mxu0
    %v348 = vpop.f32.mrf.mxu0
    %v349 = vadd.f32 0.0, %v348
    %v350 = vpop.f32.mrf.mxu0
    %351 = vdwg.mxu0
    %v352 = vpack.c.bf16 %v293, %v290
    %v353 = vpack.c.bf16 %v301, %v298
    %v354 = vpack.c.bf16 %v309, %v306
    %v355 = vpack.c.bf16 %v317, %v314
    %v356 = vpack.c.bf16 %v325, %v322
    %v357 = vpack.c.bf16 %v333, %v330
    %v358 = vpack.c.bf16 %v341, %v338
    %v359 = vpack.c.bf16 %v349, %v346
    %v360 = vld [vmem:[#allocation8] sm:$0xf]
    %v361 = vld [vmem:[#allocation8 + $0x4] sm:$0xf]
    %v362 = vld [vmem:[#allocation8 + $0x8] sm:$0xf]
    %v363 = vld [vmem:[#allocation8 + $0xc] sm:$0xf]
    %v364 = vld [vmem:[#allocation8 + $0x10] sm:$0xf]
    %v365 = vld [vmem:[#allocation8 + $0x14] sm:$0xf]
    %v366 = vld [vmem:[#allocation8 + $0x18] sm:$0xf]
    %v367 = vld [vmem:[#allocation8 + $0x1c] sm:$0xf]
    %v368 = vld [vmem:[#allocation8 + $0x20] sm:$0xf]
    %v369 = vld [vmem:[#allocation8 + $0x24] sm:$0xf]
    %v370 = vld [vmem:[#allocation8 + $0x28] sm:$0xf]
    %v371 = vld [vmem:[#allocation8 + $0x2c] sm:$0xf]
    %v372 = vld [vmem:[#allocation8 + $0x30] sm:$0xf]
    %v373 = vld [vmem:[#allocation8 + $0x34] sm:$0xf]
    %v374 = vld [vmem:[#allocation8 + $0x38] sm:$0xf]
    %v375 = vld [vmem:[#allocation8 + $0x3c] sm:$0xf]
    %v376 = vld [vmem:[#allocation10] sm:$0xf]
    %v377 = vld [vmem:[#allocation10 + $0x4] sm:$0xf]
    %v378 = vld [vmem:[#allocation10 + $0x8] sm:$0xf]
    %v379 = vld [vmem:[#allocation10 + $0xc] sm:$0xf]
    %v380 = vld [vmem:[#allocation10 + $0x10] sm:$0xf]
    %v381 = vld [vmem:[#allocation10 + $0x14] sm:$0xf]
    %v382 = vld [vmem:[#allocation10 + $0x18] sm:$0xf]
    %v383 = vld [vmem:[#allocation10 + $0x1c] sm:$0xf]
    %v384 = vld [vmem:[#allocation10 + $0x20] sm:$0xf]
    %v385 = vld [vmem:[#allocation10 + $0x24] sm:$0xf]
    %v386 = vld [vmem:[#allocation10 + $0x28] sm:$0xf]
    %v387 = vld [vmem:[#allocation10 + $0x2c] sm:$0xf]
    %v388 = vld [vmem:[#allocation10 + $0x30] sm:$0xf]
    %v389 = vld [vmem:[#allocation10 + $0x34] sm:$0xf]
    %v390 = vld [vmem:[#allocation10 + $0x38] sm:$0xf]
    %v391 = vld [vmem:[#allocation10 + $0x3c] sm:$0xf]
    %v408 = vunpack.c.l.b16 %v376
    %v409 = vunpack.c.l.b16 %v377
    %v410 = vunpack.c.l.b16 %v378
    %v411 = vunpack.c.l.b16 %v379
    %v412 = vunpack.c.l.b16 %v380
    %v413 = vunpack.c.l.b16 %v381
    %v414 = vunpack.c.l.b16 %v382
    %v415 = vunpack.c.l.b16 %v383
    %v416 = vunpack.c.l.b16 %v384
    %v417 = vunpack.c.l.b16 %v385
    %v418 = vunpack.c.l.b16 %v386
    %v419 = vunpack.c.l.b16 %v387
    %v420 = vunpack.c.l.b16 %v388
    %v421 = vunpack.c.l.b16 %v389
    %v422 = vunpack.c.l.b16 %v390
    %v423 = vunpack.c.l.b16 %v391
    %v424 = vpack.c.b16 %v409, %v408
    %v425 = vpack.c.b16 %v411, %v410
    %v426 = vpack.c.b16 %v413, %v412
    %v427 = vpack.c.b16 %v415, %v414
    %v428 = vpack.c.b16 %v417, %v416
    %v429 = vpack.c.b16 %v419, %v418
    %v430 = vpack.c.b16 %v421, %v420
    %v431 = vpack.c.b16 %v423, %v422
    %440 = vmatprep.subr.bf16.mxu0 0
    %441 = vmatpush1.bf16.msra.mxu0 %v431
    %442 = vmatprep.subr.bf16.mxu0 0
    %443 = vmatpush1.bf16.msra.mxu0 %v430
    %444 = vmatprep.subr.bf16.mxu0 0
    %445 = vmatpush1.bf16.msra.mxu0 %v429
    %446 = vmatprep.subr.bf16.mxu0 0
    %447 = vmatpush1.bf16.msra.mxu0 %v428
    %448 = vmatprep.subr.bf16.mxu0 0
    %449 = vmatpush1.bf16.msra.mxu0 %v427
    %450 = vmatprep.subr.bf16.mxu0 0
    %451 = vmatpush1.bf16.msra.mxu0 %v426
    %452 = vmatprep.subr.bf16.mxu0 0
    %453 = vmatpush1.bf16.msra.mxu0 %v425
    %454 = vmatprep.subr.bf16.mxu0 0
    %455 = vmatpush1.bf16.msra.mxu0 %v424
    %456 = vmatprep.subr.bf16.mxu0 0
    %457 = vmatpush2.bf16.msra.mxu0 0
    %458 = vmatprep.subr.bf16.mxu0 0
    %459 = vmatpush2.bf16.msra.mxu0 0
    %460 = vmatprep.subr.bf16.mxu0 0
    %461 = vmatpush2.bf16.msra.mxu0 0
    %462 = vmatprep.subr.bf16.mxu0 0
    %463 = vmatpush2.bf16.msra.mxu0 0
    %464 = vmatprep.subr.bf16.mxu0 0
    %465 = vmatpush2.bf16.msra.mxu0 0
    %466 = vmatprep.subr.bf16.mxu0 0
    %467 = vmatpush2.bf16.msra.mxu0 0
    %468 = vmatprep.subr.bf16.mxu0 0
    %469 = vmatpush2.bf16.msra.mxu0 0
    %470 = vmatprep.subr.bf16.mxu0 0
    %471 = vmatpush2.bf16.msra.mxu0 0
    %472 = vmatprep.mubr.bf16.mxu0 0
    %473 = vmatmul.mubr.bf16.gmra.mxu0 %v239
    %v474 = vpop.f32.mrf.mxu0
    %v475 = vadd.f32 0.0, %v474
    %v476 = vpop.f32.mrf.mxu0
    %v477 = vpop.f32.mrf.mxu0
    %v478 = vadd.f32 0.0, %v477
    %v479 = vpop.f32.mrf.mxu0
    %480 = vmatprep.mubr.bf16.mxu0 0
    %481 = vmatmul.mubr.bf16.gmra.mxu0 %v240
    %v482 = vpop.f32.mrf.mxu0
    %v483 = vadd.f32 0.0, %v482
    %v484 = vpop.f32.mrf.mxu0
    %v485 = vpop.f32.mrf.mxu0
    %v486 = vadd.f32 0.0, %v485
    %v487 = vpop.f32.mrf.mxu0
    %488 = vmatprep.mubr.bf16.mxu0 0
    %489 = vmatmul.mubr.bf16.gmra.mxu0 %v241
    %v490 = vpop.f32.mrf.mxu0
    %v491 = vadd.f32 0.0, %v490
    %v492 = vpop.f32.mrf.mxu0
    %v493 = vpop.f32.mrf.mxu0
    %v494 = vadd.f32 0.0, %v493
    %v495 = vpop.f32.mrf.mxu0
    %496 = vmatprep.mubr.bf16.mxu0 0
    %497 = vmatmul.mubr.bf16.gmra.mxu0 %v242
    %v498 = vpop.f32.mrf.mxu0
    %v499 = vadd.f32 0.0, %v498
    %v500 = vpop.f32.mrf.mxu0
    %v501 = vpop.f32.mrf.mxu0
    %v502 = vadd.f32 0.0, %v501
    %v503 = vpop.f32.mrf.mxu0
    %504 = vmatprep.mubr.bf16.mxu0 0
    %505 = vmatmul.mubr.bf16.gmra.mxu0 %v243
    %v506 = vpop.f32.mrf.mxu0
    %v507 = vadd.f32 0.0, %v506
    %v508 = vpop.f32.mrf.mxu0
    %v509 = vpop.f32.mrf.mxu0
    %v510 = vadd.f32 0.0, %v509
    %v511 = vpop.f32.mrf.mxu0
    %512 = vmatprep.mubr.bf16.mxu0 0
    %513 = vmatmul.mubr.bf16.gmra.mxu0 %v244
    %v514 = vpop.f32.mrf.mxu0
    %v515 = vadd.f32 0.0, %v514
    %v516 = vpop.f32.mrf.mxu0
    %v517 = vpop.f32.mrf.mxu0
    %v518 = vadd.f32 0.0, %v517
    %v519 = vpop.f32.mrf.mxu0
    %520 = vmatprep.mubr.bf16.mxu0 0
    %521 = vmatmul.mubr.bf16.gmra.mxu0 %v245
    %v522 = vpop.f32.mrf.mxu0
    %v523 = vadd.f32 0.0, %v522
    %v524 = vpop.f32.mrf.mxu0
    %v525 = vpop.f32.mrf.mxu0
    %v526 = vadd.f32 0.0, %v525
    %v527 = vpop.f32.mrf.mxu0
    %528 = vmatprep.mubr.bf16.mxu0 0
    %529 = vmatmul.mubr.bf16.gmra.mxu0 %v246
    %v530 = vpop.f32.mrf.mxu0
    %v531 = vadd.f32 0.0, %v530
    %v532 = vpop.f32.mrf.mxu0
    %v533 = vpop.f32.mrf.mxu0
    %v534 = vadd.f32 0.0, %v533
    %v535 = vpop.f32.mrf.mxu0
    %536 = vdwg.mxu0
    %v553 = vunpack.c.l.b16 %v360
    %v554 = vunpack.c.l.b16 %v361
    %v555 = vunpack.c.l.b16 %v362
    %v556 = vunpack.c.l.b16 %v363
    %v557 = vunpack.c.l.b16 %v364
    %v558 = vunpack.c.l.b16 %v365
    %v559 = vunpack.c.l.b16 %v366
    %v560 = vunpack.c.l.b16 %v367
    %v561 = vunpack.c.l.b16 %v368
    %v562 = vunpack.c.l.b16 %v369
    %v563 = vunpack.c.l.b16 %v370
    %v564 = vunpack.c.l.b16 %v371
    %v565 = vunpack.c.l.b16 %v372
    %v566 = vunpack.c.l.b16 %v373
    %v567 = vunpack.c.l.b16 %v374
    %v568 = vunpack.c.l.b16 %v375
    %v569 = vpack.c.b16 %v554, %v553
    %v570 = vpack.c.b16 %v556, %v555
    %v571 = vpack.c.b16 %v558, %v557
    %v572 = vpack.c.b16 %v560, %v559
    %v573 = vpack.c.b16 %v562, %v561
    %v574 = vpack.c.b16 %v564, %v563
    %v575 = vpack.c.b16 %v566, %v565
    %v576 = vpack.c.b16 %v568, %v567
    %585 = vmatprep.subr.bf16.mxu0 0
    %586 = vmatpush1.bf16.msra.mxu0 %v576
    %587 = vmatprep.subr.bf16.mxu0 0
    %588 = vmatpush1.bf16.msra.mxu0 %v575
    %589 = vmatprep.subr.bf16.mxu0 0
    %590 = vmatpush1.bf16.msra.mxu0 %v574
    %591 = vmatprep.subr.bf16.mxu0 0
    %592 = vmatpush1.bf16.msra.mxu0 %v573
    %593 = vmatprep.subr.bf16.mxu0 0
    %594 = vmatpush1.bf16.msra.mxu0 %v572
    %595 = vmatprep.subr.bf16.mxu0 0
    %596 = vmatpush1.bf16.msra.mxu0 %v571
    %597 = vmatprep.subr.bf16.mxu0 0
    %598 = vmatpush1.bf16.msra.mxu0 %v570
    %599 = vmatprep.subr.bf16.mxu0 0
    %600 = vmatpush1.bf16.msra.mxu0 %v569
    %601 = vmatprep.subr.bf16.mxu0 0
    %602 = vmatpush2.bf16.msra.mxu0 0
    %603 = vmatprep.subr.bf16.mxu0 0
    %604 = vmatpush2.bf16.msra.mxu0 0
    %605 = vmatprep.subr.bf16.mxu0 0
    %606 = vmatpush2.bf16.msra.mxu0 0
    %607 = vmatprep.subr.bf16.mxu0 0
    %608 = vmatpush2.bf16.msra.mxu0 0
    %609 = vmatprep.subr.bf16.mxu0 0
    %610 = vmatpush2.bf16.msra.mxu0 0
    %611 = vmatprep.subr.bf16.mxu0 0
    %612 = vmatpush2.bf16.msra.mxu0 0
    %613 = vmatprep.subr.bf16.mxu0 0
    %614 = vmatpush2.bf16.msra.mxu0 0
    %615 = vmatprep.subr.bf16.mxu0 0
    %616 = vmatpush2.bf16.msra.mxu0 0
    %617 = vmatprep.mubr.bf16.mxu0 0
    %618 = vmatmul.mubr.bf16.gmra.mxu0 %v352
    %v619 = vpop.f32.mrf.mxu0
    %v620 = vadd.f32 %v475, %v619
    %v621 = vpop.f32.mrf.mxu0
    %v622 = vpop.f32.mrf.mxu0
    %v623 = vadd.f32 %v478, %v622
    %v624 = vpop.f32.mrf.mxu0
    %625 = vmatprep.mubr.bf16.mxu0 0
    %626 = vmatmul.mubr.bf16.gmra.mxu0 %v353
    %v627 = vpop.f32.mrf.mxu0
    %v628 = vadd.f32 %v483, %v627
    %v629 = vpop.f32.mrf.mxu0
    %v630 = vpop.f32.mrf.mxu0
    %v631 = vadd.f32 %v486, %v630
    %v632 = vpop.f32.mrf.mxu0
    %633 = vmatprep.mubr.bf16.mxu0 0
    %634 = vmatmul.mubr.bf16.gmra.mxu0 %v354
    %v635 = vpop.f32.mrf.mxu0
    %v636 = vadd.f32 %v491, %v635
    %v637 = vpop.f32.mrf.mxu0
    %v638 = vpop.f32.mrf.mxu0
    %v639 = vadd.f32 %v494, %v638
    %v640 = vpop.f32.mrf.mxu0
    %641 = vmatprep.mubr.bf16.mxu0 0
    %642 = vmatmul.mubr.bf16.gmra.mxu0 %v355
    %v643 = vpop.f32.mrf.mxu0
    %v644 = vadd.f32 %v499, %v643
    %v645 = vpop.f32.mrf.mxu0
    %v646 = vpop.f32.mrf.mxu0
    %v647 = vadd.f32 %v502, %v646
    %v648 = vpop.f32.mrf.mxu0
    %649 = vmatprep.mubr.bf16.mxu0 0
    %650 = vmatmul.mubr.bf16.gmra.mxu0 %v356
    %v651 = vpop.f32.mrf.mxu0
    %v652 = vadd.f32 %v507, %v651
    %v653 = vpop.f32.mrf.mxu0
    %v654 = vpop.f32.mrf.mxu0
    %v655 = vadd.f32 %v510, %v654
    %v656 = vpop.f32.mrf.mxu0
    %657 = vmatprep.mubr.bf16.mxu0 0
    %658 = vmatmul.mubr.bf16.gmra.mxu0 %v357
    %v659 = vpop.f32.mrf.mxu0
    %v660 = vadd.f32 %v515, %v659
    %v661 = vpop.f32.mrf.mxu0
    %v662 = vpop.f32.mrf.mxu0
    %v663 = vadd.f32 %v518, %v662
    %v664 = vpop.f32.mrf.mxu0
    %665 = vmatprep.mubr.bf16.mxu0 0
    %666 = vmatmul.mubr.bf16.gmra.mxu0 %v358
    %v667 = vpop.f32.mrf.mxu0
    %v668 = vadd.f32 %v523, %v667
    %v669 = vpop.f32.mrf.mxu0
    %v670 = vpop.f32.mrf.mxu0
    %v671 = vadd.f32 %v526, %v670
    %v672 = vpop.f32.mrf.mxu0
    %673 = vmatprep.mubr.bf16.mxu0 0
    %674 = vmatmul.mubr.bf16.gmra.mxu0 %v359
    %v675 = vpop.f32.mrf.mxu0
    %v676 = vadd.f32 %v531, %v675
    %v677 = vpop.f32.mrf.mxu0
    %v678 = vpop.f32.mrf.mxu0
    %v679 = vadd.f32 %v534, %v678
    %v680 = vpop.f32.mrf.mxu0
    %681 = vdwg.mxu0
    %v682 = vlaneseq
    %v683 = vshrl.u32 %v682, 7
    %v684 = vsub.s32 0, %v683
    %v685 = vrot.slane %v126, %v684
    %v686 = vadd.f32 %v620, %v685
    %v687 = vadd.f32 %v623, %v685
    %v688 = vadd.f32 %v628, %v685
    %v689 = vadd.f32 %v631, %v685
    %v690 = vadd.f32 %v636, %v685
    %v691 = vadd.f32 %v639, %v685
    %v692 = vadd.f32 %v644, %v685
    %v693 = vadd.f32 %v647, %v685
    %v694 = vadd.f32 %v652, %v685
    %v695 = vadd.f32 %v655, %v685
    %v696 = vadd.f32 %v660, %v685
    %v697 = vadd.f32 %v663, %v685
    %v698 = vadd.f32 %v668, %v685
    %v699 = vadd.f32 %v671, %v685
    %v700 = vadd.f32 %v676, %v685
    %v701 = vadd.f32 %v679, %v685
    %v702 = vmul.f32 %v686, %v686
    %v703 = vmul.f32 %v687, %v687
    %v704 = vmul.f32 %v688, %v688
    %v705 = vmul.f32 %v689, %v689
    %v706 = vmul.f32 %v690, %v690
    %v707 = vmul.f32 %v691, %v691
    %v708 = vmul.f32 %v692, %v692
    %v709 = vmul.f32 %v693, %v693
    %v710 = vmul.f32 %v694, %v694
    %v711 = vmul.f32 %v695, %v695
    %v712 = vmul.f32 %v696, %v696
    %v713 = vmul.f32 %v697, %v697
    %v714 = vmul.f32 %v698, %v698
    %v715 = vmul.f32 %v699, %v699
    %v716 = vmul.f32 %v700, %v700
    %v717 = vmul.f32 %v701, %v701
    %718 = vadd.xlane.f32.xlu0 %v702
    %v719 = vpop.xlane.xlu0 %718
    %720 = vadd.xlane.f32.xlu0 %v703
    %v721 = vpop.xlane.xlu0 %720
    %722 = vadd.xlane.f32.xlu0 %v704
    %v723 = vpop.xlane.xlu0 %722
    %724 = vadd.xlane.f32.xlu0 %v705
    %v725 = vpop.xlane.xlu0 %724
    %726 = vadd.xlane.f32.xlu0 %v706
    %v727 = vpop.xlane.xlu0 %726
    %728 = vadd.xlane.f32.xlu0 %v707
    %v729 = vpop.xlane.xlu0 %728
    %730 = vadd.xlane.f32.xlu0 %v708
    %v731 = vpop.xlane.xlu0 %730
    %732 = vadd.xlane.f32.xlu0 %v709
    %v733 = vpop.xlane.xlu0 %732
    %734 = vadd.xlane.f32.xlu0 %v710
    %v735 = vpop.xlane.xlu0 %734
    %736 = vadd.xlane.f32.xlu0 %v711
    %v737 = vpop.xlane.xlu0 %736
    %738 = vadd.xlane.f32.xlu0 %v712
    %v739 = vpop.xlane.xlu0 %738
    %740 = vadd.xlane.f32.xlu0 %v713
    %v741 = vpop.xlane.xlu0 %740
    %742 = vadd.xlane.f32.xlu0 %v714
    %v743 = vpop.xlane.xlu0 %742
    %744 = vadd.xlane.f32.xlu0 %v715
    %v745 = vpop.xlane.xlu0 %744
    %746 = vadd.xlane.f32.xlu0 %v716
    %v747 = vpop.xlane.xlu0 %746
    %748 = vadd.xlane.f32.xlu0 %v717
    %v749 = vpop.xlane.xlu0 %748
    %v750 = vmax.f32 %v719, 1e-24
    %v751 = vmax.f32 %v721, 1e-24
    %v752 = vmax.f32 %v723, 1e-24
    %v753 = vmax.f32 %v725, 1e-24
    %v754 = vmax.f32 %v727, 1e-24
    %v755 = vmax.f32 %v729, 1e-24
    %v756 = vmax.f32 %v731, 1e-24
    %v757 = vmax.f32 %v733, 1e-24
    %v758 = vmax.f32 %v735, 1e-24
    %v759 = vmax.f32 %v737, 1e-24
    %v760 = vmax.f32 %v739, 1e-24
    %v761 = vmax.f32 %v741, 1e-24
    %v762 = vmax.f32 %v743, 1e-24
    %v763 = vmax.f32 %v745, 1e-24
    %v764 = vmax.f32 %v747, 1e-24
    %v765 = vmax.f32 %v749, 1e-24
    %v766 = vrsqrt.pop %v750
    %v767 = vrsqrt.pop %v751
    %v768 = vrsqrt.pop %v752
    %v769 = vrsqrt.pop %v753
    %v770 = vrsqrt.pop %v754
    %v771 = vrsqrt.pop %v755
    %v772 = vrsqrt.pop %v756
    %v773 = vrsqrt.pop %v757
    %v774 = vrsqrt.pop %v758
    %v775 = vrsqrt.pop %v759
    %v776 = vrsqrt.pop %v760
    %v777 = vrsqrt.pop %v761
    %v778 = vrsqrt.pop %v762
    %v779 = vrsqrt.pop %v763
    %v780 = vrsqrt.pop %v764
    %v781 = vrsqrt.pop %v765
    %v782 = vmul.f32 %v686, %v766
    %v783 = vmul.f32 %v687, %v767
    %v784 = vmul.f32 %v688, %v768
    %v785 = vmul.f32 %v689, %v769
    %v786 = vmul.f32 %v690, %v770
    %v787 = vmul.f32 %v691, %v771
    %v788 = vmul.f32 %v692, %v772
    %v789 = vmul.f32 %v693, %v773
    %v790 = vmul.f32 %v694, %v774
    %v791 = vmul.f32 %v695, %v775
    %v792 = vmul.f32 %v696, %v776
    %v793 = vmul.f32 %v697, %v777
    %v794 = vmul.f32 %v698, %v778
    %v795 = vmul.f32 %v699, %v779
    %v796 = vmul.f32 %v700, %v780
    %v797 = vmul.f32 %v701, %v781
    %v798 = vmax.f32 %v782, 0.0
    %v799 = vmax.f32 %v783, 0.0
    %v800 = vmax.f32 %v784, 0.0
    %v801 = vmax.f32 %v785, 0.0
    %v802 = vmax.f32 %v786, 0.0
    %v803 = vmax.f32 %v787, 0.0
    %v804 = vmax.f32 %v788, 0.0
    %v805 = vmax.f32 %v789, 0.0
    %v806 = vmax.f32 %v790, 0.0
    %v807 = vmax.f32 %v791, 0.0
    %v808 = vmax.f32 %v792, 0.0
    %v809 = vmax.f32 %v793, 0.0
    %v810 = vmax.f32 %v794, 0.0
    %v811 = vmax.f32 %v795, 0.0
    %v812 = vmax.f32 %v796, 0.0
    %v813 = vmax.f32 %v797, 0.0
    %v814 = vpack.c.bf16 %v799, %v798
    %v815 = vpack.c.bf16 %v801, %v800
    %v816 = vpack.c.bf16 %v803, %v802
    %v817 = vpack.c.bf16 %v805, %v804
    %v818 = vpack.c.bf16 %v807, %v806
    %v819 = vpack.c.bf16 %v809, %v808
    %v820 = vpack.c.bf16 %v811, %v810
    %v821 = vpack.c.bf16 %v813, %v812
    %v822 = vld [vmem:[#allocation5] sm:$0xf]
    %v823 = vld [vmem:[#allocation5 + $0x4] sm:$0xf]
    %v826 = vunpack.c.l.b16 %v822
    %v827 = vunpack.c.l.b16 %v823
    %v828 = vpack.c.b16 %v827, %v826
    %830 = vmatprep.subr.bf16.mxu0 0
    %831 = vmatpush1.bf16.msra.mxu0 %v821
    %832 = vmatprep.subr.bf16.mxu0 0
    %833 = vmatpush1.bf16.msra.mxu0 %v820
    %834 = vmatprep.subr.bf16.mxu0 0
    %835 = vmatpush1.bf16.msra.mxu0 %v819
    %836 = vmatprep.subr.bf16.mxu0 0
    %837 = vmatpush1.bf16.msra.mxu0 %v818
    %838 = vmatprep.subr.bf16.mxu0 0
    %839 = vmatpush1.bf16.msra.mxu0 %v817
    %840 = vmatprep.subr.bf16.mxu0 0
    %841 = vmatpush1.bf16.msra.mxu0 %v816
    %842 = vmatprep.subr.bf16.mxu0 0
    %843 = vmatpush1.bf16.msra.mxu0 %v815
    %844 = vmatprep.subr.bf16.mxu0 0
    %845 = vmatpush1.bf16.msra.mxu0 %v814
    %846 = vmatprep.subr.bf16.mxu0 0
    %847 = vmatpush2.bf16.msra.mxu0 0
    %848 = vmatprep.subr.bf16.mxu0 0
    %849 = vmatpush2.bf16.msra.mxu0 0
    %850 = vmatprep.subr.bf16.mxu0 0
    %851 = vmatpush2.bf16.msra.mxu0 0
    %852 = vmatprep.subr.bf16.mxu0 0
    %853 = vmatpush2.bf16.msra.mxu0 0
    %854 = vmatprep.subr.bf16.mxu0 0
    %855 = vmatpush2.bf16.msra.mxu0 0
    %856 = vmatprep.subr.bf16.mxu0 0
    %857 = vmatpush2.bf16.msra.mxu0 0
    %858 = vmatprep.subr.bf16.mxu0 0
    %859 = vmatpush2.bf16.msra.mxu0 0
    %860 = vmatprep.subr.bf16.mxu0 0
    %861 = vmatpush2.bf16.msra.mxu0 0
    %862 = vmatprep.mubr.bf16.mxu0 0
    %863 = vmatmul.mubr.bf16.gmra.mxu0 %v828
    %v864 = vpop.f32.mrf.mxu0
    %v865 = vadd.f32 0.0, %v864
    %v866 = vpop.f32.mrf.mxu0
    %v867 = vpop.f32.mrf.mxu0
    %v868 = vadd.f32 0.0, %v867
    %v869 = vpop.f32.mrf.mxu0
    %870 = vdwg.mxu0
    %v871 = vpack.c.bf16 %v868, %v865
    %v872 = vld [vmem:[#allocation11] sm:$0xf]
    %v873 = vld [vmem:[#allocation11 + $0x4] sm:$0xf]
    %v874 = vld [vmem:[#allocation11 + $0x8] sm:$0xf]
    %v875 = vld [vmem:[#allocation11 + $0xc] sm:$0xf]
    %v876 = vld [vmem:[#allocation11 + $0x10] sm:$0xf]
    %v877 = vld [vmem:[#allocation11 + $0x14] sm:$0xf]
    %v878 = vld [vmem:[#allocation11 + $0x18] sm:$0xf]
    %v879 = vld [vmem:[#allocation11 + $0x1c] sm:$0xf]
    %v880 = vld [vmem:[#allocation11 + $0x20] sm:$0xf]
    %v881 = vld [vmem:[#allocation11 + $0x24] sm:$0xf]
    %v882 = vld [vmem:[#allocation11 + $0x28] sm:$0xf]
    %v883 = vld [vmem:[#allocation11 + $0x2c] sm:$0xf]
    %v884 = vld [vmem:[#allocation11 + $0x30] sm:$0xf]
    %v885 = vld [vmem:[#allocation11 + $0x34] sm:$0xf]
    %v886 = vld [vmem:[#allocation11 + $0x38] sm:$0xf]
    %v887 = vld [vmem:[#allocation11 + $0x3c] sm:$0xf]
    %v888 = vld [vmem:[#allocation13] sm:$0xf]
    %v889 = vld [vmem:[#allocation13 + $0x4] sm:$0xf]
    %v890 = vld [vmem:[#allocation13 + $0x8] sm:$0xf]
    %v891 = vld [vmem:[#allocation13 + $0xc] sm:$0xf]
    %v892 = vld [vmem:[#allocation13 + $0x10] sm:$0xf]
    %v893 = vld [vmem:[#allocation13 + $0x14] sm:$0xf]
    %v894 = vld [vmem:[#allocation13 + $0x18] sm:$0xf]
    %v895 = vld [vmem:[#allocation13 + $0x1c] sm:$0xf]
    %v896 = vld [vmem:[#allocation13 + $0x20] sm:$0xf]
    %v897 = vld [vmem:[#allocation13 + $0x24] sm:$0xf]
    %v898 = vld [vmem:[#allocation13 + $0x28] sm:$0xf]
    %v899 = vld [vmem:[#allocation13 + $0x2c] sm:$0xf]
    %v900 = vld [vmem:[#allocation13 + $0x30] sm:$0xf]
    %v901 = vld [vmem:[#allocation13 + $0x34] sm:$0xf]
    %v902 = vld [vmem:[#allocation13 + $0x38] sm:$0xf]
    %v903 = vld [vmem:[#allocation13 + $0x3c] sm:$0xf]
    %v920 = vunpack.c.l.b16 %v888
    %v921 = vunpack.c.l.b16 %v889
    %v922 = vunpack.c.l.b16 %v890
    %v923 = vunpack.c.l.b16 %v891
    %v924 = vunpack.c.l.b16 %v892
    %v925 = vunpack.c.l.b16 %v893
    %v926 = vunpack.c.l.b16 %v894
    %v927 = vunpack.c.l.b16 %v895
    %v928 = vunpack.c.l.b16 %v896
    %v929 = vunpack.c.l.b16 %v897
    %v930 = vunpack.c.l.b16 %v898
    %v931 = vunpack.c.l.b16 %v899
    %v932 = vunpack.c.l.b16 %v900
    %v933 = vunpack.c.l.b16 %v901
    %v934 = vunpack.c.l.b16 %v902
    %v935 = vunpack.c.l.b16 %v903
    %v936 = vpack.c.b16 %v921, %v920
    %v937 = vpack.c.b16 %v923, %v922
    %v938 = vpack.c.b16 %v925, %v924
    %v939 = vpack.c.b16 %v927, %v926
    %v940 = vpack.c.b16 %v929, %v928
    %v941 = vpack.c.b16 %v931, %v930
    %v942 = vpack.c.b16 %v933, %v932
    %v943 = vpack.c.b16 %v935, %v934
    %952 = vmatprep.subr.bf16.mxu0 0
    %953 = vmatpush1.bf16.msra.mxu0 %v943
    %954 = vmatprep.subr.bf16.mxu0 0
    %955 = vmatpush1.bf16.msra.mxu0 %v942
    %956 = vmatprep.subr.bf16.mxu0 0
    %957 = vmatpush1.bf16.msra.mxu0 %v941
    %958 = vmatprep.subr.bf16.mxu0 0
    %959 = vmatpush1.bf16.msra.mxu0 %v940
    %960 = vmatprep.subr.bf16.mxu0 0
    %961 = vmatpush1.bf16.msra.mxu0 %v939
    %962 = vmatprep.subr.bf16.mxu0 0
    %963 = vmatpush1.bf16.msra.mxu0 %v938
    %964 = vmatprep.subr.bf16.mxu0 0
    %965 = vmatpush1.bf16.msra.mxu0 %v937
    %966 = vmatprep.subr.bf16.mxu0 0
    %967 = vmatpush1.bf16.msra.mxu0 %v936
    %968 = vmatprep.subr.bf16.mxu0 0
    %969 = vmatpush2.bf16.msra.mxu0 0
    %970 = vmatprep.subr.bf16.mxu0 0
    %971 = vmatpush2.bf16.msra.mxu0 0
    %972 = vmatprep.subr.bf16.mxu0 0
    %973 = vmatpush2.bf16.msra.mxu0 0
    %974 = vmatprep.subr.bf16.mxu0 0
    %975 = vmatpush2.bf16.msra.mxu0 0
    %976 = vmatprep.subr.bf16.mxu0 0
    %977 = vmatpush2.bf16.msra.mxu0 0
    %978 = vmatprep.subr.bf16.mxu0 0
    %979 = vmatpush2.bf16.msra.mxu0 0
    %980 = vmatprep.subr.bf16.mxu0 0
    %981 = vmatpush2.bf16.msra.mxu0 0
    %982 = vmatprep.subr.bf16.mxu0 0
    %983 = vmatpush2.bf16.msra.mxu0 0
    %984 = vmatprep.mubr.bf16.mxu0 0
    %985 = vmatmul.mubr.bf16.gmra.mxu0 %v814
    %v986 = vpop.f32.mrf.mxu0
    %v987 = vadd.f32 0.0, %v986
    %v988 = vpop.f32.mrf.mxu0
    %v989 = vpop.f32.mrf.mxu0
    %v990 = vadd.f32 0.0, %v989
    %v991 = vpop.f32.mrf.mxu0
    %992 = vdwg.mxu0
    %v1009 = vunpack.c.l.b16 %v872
    %v1010 = vunpack.c.l.b16 %v873
    %v1011 = vunpack.c.l.b16 %v874
    %v1012 = vunpack.c.l.b16 %v875
    %v1013 = vunpack.c.l.b16 %v876
    %v1014 = vunpack.c.l.b16 %v877
    %v1015 = vunpack.c.l.b16 %v878
    %v1016 = vunpack.c.l.b16 %v879
    %v1017 = vunpack.c.l.b16 %v880
    %v1018 = vunpack.c.l.b16 %v881
    %v1019 = vunpack.c.l.b16 %v882
    %v1020 = vunpack.c.l.b16 %v883
    %v1021 = vunpack.c.l.b16 %v884
    %v1022 = vunpack.c.l.b16 %v885
    %v1023 = vunpack.c.l.b16 %v886
    %v1024 = vunpack.c.l.b16 %v887
    %v1025 = vpack.c.b16 %v1010, %v1009
    %v1026 = vpack.c.b16 %v1012, %v1011
    %v1027 = vpack.c.b16 %v1014, %v1013
    %v1028 = vpack.c.b16 %v1016, %v1015
    %v1029 = vpack.c.b16 %v1018, %v1017
    %v1030 = vpack.c.b16 %v1020, %v1019
    %v1031 = vpack.c.b16 %v1022, %v1021
    %v1032 = vpack.c.b16 %v1024, %v1023
    %1041 = vmatprep.subr.bf16.mxu0 0
    %1042 = vmatpush1.bf16.msra.mxu0 %v1032
    %1043 = vmatprep.subr.bf16.mxu0 0
    %1044 = vmatpush1.bf16.msra.mxu0 %v1031
    %1045 = vmatprep.subr.bf16.mxu0 0
    %1046 = vmatpush1.bf16.msra.mxu0 %v1030
    %1047 = vmatprep.subr.bf16.mxu0 0
    %1048 = vmatpush1.bf16.msra.mxu0 %v1029
    %1049 = vmatprep.subr.bf16.mxu0 0
    %1050 = vmatpush1.bf16.msra.mxu0 %v1028
    %1051 = vmatprep.subr.bf16.mxu0 0
    %1052 = vmatpush1.bf16.msra.mxu0 %v1027
    %1053 = vmatprep.subr.bf16.mxu0 0
    %1054 = vmatpush1.bf16.msra.mxu0 %v1026
    %1055 = vmatprep.subr.bf16.mxu0 0
    %1056 = vmatpush1.bf16.msra.mxu0 %v1025
    %1057 = vmatprep.subr.bf16.mxu0 0
    %1058 = vmatpush2.bf16.msra.mxu0 0
    %1059 = vmatprep.subr.bf16.mxu0 0
    %1060 = vmatpush2.bf16.msra.mxu0 0
    %1061 = vmatprep.subr.bf16.mxu0 0
    %1062 = vmatpush2.bf16.msra.mxu0 0
    %1063 = vmatprep.subr.bf16.mxu0 0
    %1064 = vmatpush2.bf16.msra.mxu0 0
    %1065 = vmatprep.subr.bf16.mxu0 0
    %1066 = vmatpush2.bf16.msra.mxu0 0
    %1067 = vmatprep.subr.bf16.mxu0 0
    %1068 = vmatpush2.bf16.msra.mxu0 0
    %1069 = vmatprep.subr.bf16.mxu0 0
    %1070 = vmatpush2.bf16.msra.mxu0 0
    %1071 = vmatprep.subr.bf16.mxu0 0
    %1072 = vmatpush2.bf16.msra.mxu0 0
    %1073 = vmatprep.mubr.bf16.mxu0 0
    %1074 = vmatmul.mubr.bf16.gmra.mxu0 %v871
    %v1075 = vpop.f32.mrf.mxu0
    %v1076 = vadd.f32 %v987, %v1075
    %v1077 = vpop.f32.mrf.mxu0
    %v1078 = vpop.f32.mrf.mxu0
    %v1079 = vadd.f32 %v990, %v1078
    %v1080 = vpop.f32.mrf.mxu0
    %1081 = vdwg.mxu0
    %v1082 = vlaneseq
    %v1083 = vshrl.u32 %v1082, 7
    %v1084 = vsub.s32 1, %v1083
    %v1085 = vrot.slane %v126, %v1084
    %v1086 = vadd.f32 %v1076, %v1085
    %v1087 = vadd.f32 %v1079, %v1085
    %v1088 = vmul.f32 %v1086, %v1086
    %v1089 = vmul.f32 %v1087, %v1087
    %1090 = vadd.xlane.f32.xlu0 %v1088
    %v1091 = vpop.xlane.xlu0 %1090
    %1092 = vadd.xlane.f32.xlu0 %v1089
    %v1093 = vpop.xlane.xlu0 %1092
    %v1094 = vmax.f32 %v1091, 1e-24
    %v1095 = vmax.f32 %v1093, 1e-24
    %v1096 = vrsqrt.pop %v1094
    %v1097 = vrsqrt.pop %v1095
    %v1098 = vmul.f32 %v1086, %v1096
    %v1099 = vmul.f32 %v1087, %v1097
    %1100 = vst [vmem:[#allocation14] sm:$0xff] %v1098
    %1101 = vst [vmem:[#allocation14 + $0x8] sm:$0xff] %v1099
    // Predicated region
    $region62: #{_sage2_call.1} parent=1 // pred_check
      _
    $region63: #{_sage2_call.1} parent=1 // pred_check_branch
      %1103 = sbr.rel (0) target = $region65
    $region64: #{_sage2_call.1} parent=1 // pred_region
      %s1105 = ssub.s32 256, 256
      %1106 = vsyncadd [#allocation4], %s1105
      %s1107 = sshll.u32 [#allocation14], 4
      %s1108 = int_to_ptr.vmem [resolvable:$true] %s1107
      %1113 = dma.vmem_to_hbm [thread:$0]  %s1108, 256, %s8, [#allocation4], 128, 128, 8
    $region65: #{_sage2_call.1} parent=1 // pred_fallthru
      _
    // Predicated region
    $region66: #{_sage2_call.1} parent=1 // pred_check
      _
    $region67: #{_sage2_call.1} parent=1 // pred_check_branch
      %1115 = sbr.rel (0) target = $region69
    $region68: #{_sage2_call.1} parent=1 // pred_region
      %1116 = dma.done [#allocation4], 256
    $region69: #{_sage2_call.1} parent=1 // pred_fallthru
      _
    %1117 = vsyncpa [#allocation3], 1
    %1118 = vsyncpa [#allocation6], 1
    %1119 = vsyncpa [#allocation9], 1
    %1120 = vsyncpa [#allocation12], 1
    %1121 = vsyncpa [#allocation4], 1

</llo_original>
